<compile_context>
chip_gen: v6e
topology: v6e:2x2x1
jax: 0.10.0
libtpu: 0.0.40
codegen_flags: <defaults>
</compile_context>

<pallas_src>
import jax
import jax.numpy as jnp
from jax.experimental import pallas as pl
from jax.experimental.pallas import tpu as pltpu

LANE = 128
SUBLANE = 8


def _round_up(x, m):
    return ((x + m - 1) // m) * m


def qnetwork_kernel(x_ref, w1_ref, b1_ref, w2_ref, b2_ref, w3_ref, b3_ref, out_ref):
    """One batch tile: (TB, S) -> (TB, A_pad). All operands VMEM-resident."""
    w1 = w1_ref[...]
    w2 = w2_ref[...]
    w3 = w3_ref[...]

    # Cast activations to the weight dtype (no-op for f32 weights, bf16 MXU
    # path for bf16 weights); accumulate in f32, bias/ReLU math in f32.
    x = x_ref[...].astype(w1.dtype)
    h1 = jnp.dot(x, w1, preferred_element_type=jnp.float32)
    h1 = jnp.maximum(h1 + b1_ref[...].astype(jnp.float32), 0.0)

    h2 = jnp.dot(h1.astype(w2.dtype), w2, preferred_element_type=jnp.float32)
    h2 = jnp.maximum(h2 + b2_ref[...].astype(jnp.float32), 0.0)

    q = jnp.dot(h2.astype(w3.dtype), w3, preferred_element_type=jnp.float32)
    q = q + b3_ref[...].astype(jnp.float32)
    out_ref[...] = q.astype(out_ref.dtype)


def qnetwork_forward(x, params, *, block_b=256):
    """x: (B, state_size) float32; params: dict of w1,b1,w2,b2,w3,b3."""
    w1, b1 = params["w1"], params["b1"]
    w2, b2 = params["w2"], params["b2"]
    w3, b3 = params["w3"], params["b3"]

    B, S = x.shape
    A = w3.shape[1]

    # Lane-dense output: pad the last layer to a multiple of 128 output cols.
    A_pad = _round_up(max(A, LANE), LANE)
    w3p = jnp.zeros((w3.shape[0], A_pad), w3.dtype).at[:, :A].set(w3)
    b3p = jnp.zeros((1, A_pad), b3.dtype).at[:, :A].set(b3)

    # Batch tile: multiple of 8 sublanes, capped at block_b; pad B up to a
    # multiple of the tile so the grid divides evenly.
    TB = min(_round_up(block_b, SUBLANE), _round_up(B, SUBLANE))
    Bp = _round_up(B, TB)
    if Bp != B:
        x = jnp.zeros((Bp, S), x.dtype).at[:B, :].set(x)

    grid = (pl.cdiv(Bp, TB),)
    const = lambda a: pl.BlockSpec(a.shape, lambda i: (0,) * a.ndim)  # weights stay resident

    out = pl.pallas_call(
        qnetwork_kernel,
        out_shape=jax.ShapeDtypeStruct((Bp, A_pad), jnp.float32),
        grid=grid,
        in_specs=[
            pl.BlockSpec((TB, S), lambda i: (i, 0)),   # x: streamed over batch
            const(w1), const(b1),
            const(w2), const(b2),
            const(w3p), const(b3p),
        ],
        out_specs=pl.BlockSpec((TB, A_pad), lambda i: (i, 0)),
        compiler_params=pltpu.CompilerParams(
            dimension_semantics=("parallel",),   # shard batch tiles across TCs (v7x)
        ),
    )(x, w1, b1, w2, b2, w3p, b3p)

    return out[:B, :A]


def init_qnetwork_params(key, state_size, action_size, fc1_units=64, fc2_units=64):
    """Deterministic init mimicking nn.Linear default (uniform +/- 1/sqrt(fan_in))."""
    ks = jax.random.split(key, 6)

    def linear(kw, kb, fan_in, fan_out):
        bound = 1.0 / jnp.sqrt(jnp.float32(fan_in))
        w = jax.random.uniform(kw, (fan_in, fan_out), jnp.float32, -bound, bound)
        b = jax.random.uniform(kb, (1, fan_out), jnp.float32, -bound, bound)
        return w, b

    w1, b1 = linear(ks[0], ks[1], state_size, fc1_units)
    w2, b2 = linear(ks[2], ks[3], fc1_units, fc2_units)
    w3, b3 = linear(ks[4], ks[5], fc2_units, action_size)
    return {"w1": w1, "b1": b1, "w2": w2, "b2": b2, "w3": w3, "b3": b3}


def cast_params(params, dtype):
    """Cast weights/biases (e.g. to bf16 for the v6e/v7x MXU); accumulation stays f32."""
    return {k: v.astype(dtype) for k, v in params.items()}


def qnetwork_reference(x, params):
    """Pure-JAX f32 reference for correctness check."""
    h1 = jnp.maximum(x @ params["w1"] + params["b1"], 0.0)
    h2 = jnp.maximum(h1 @ params["w2"] + params["b2"], 0.0)
    return h2 @ params["w3"] + params["b3"]


if __name__ == "__main__":
    STATE_SIZE, ACTION_SIZE = 8, 4

    key = jax.random.PRNGKey(0)
    k_params, k_x1, k_x2 = jax.random.split(key, 3)
    params = init_qnetwork_params(k_params, STATE_SIZE, ACTION_SIZE)

    # 1) Tiny batch (single-state-ish inference path; batch gets padded to 8 rows).
    x_small = jax.random.normal(k_x1, (2, STATE_SIZE), jnp.float32)
    out_small = jax.block_until_ready(qnetwork_forward(x_small, params))
    ref_small = qnetwork_reference(x_small, params)
    assert out_small.shape == (2, ACTION_SIZE)
    assert jnp.allclose(out_small, ref_small, atol=1e-4, rtol=1e-4)

    # 2) Replay-buffer-sized batch exercising the multi-step batch grid
    #    (TB=128 -> grid of 2 steps, weights resident across steps).
    x_big = jax.random.normal(k_x2, (256, STATE_SIZE), jnp.float32)
    out_big = jax.block_until_ready(qnetwork_forward(x_big, params, block_b=128))
    ref_big = qnetwork_reference(x_big, params)
    assert out_big.shape == (256, ACTION_SIZE)
    assert jnp.allclose(out_big, ref_big, atol=1e-4, rtol=1e-4)

    # 3) bf16-weight variant (v6e/v7x MXU path), f32 accumulation in-kernel.
    params_bf16 = cast_params(params, jnp.bfloat16)
    out_bf16 = jax.block_until_ready(qnetwork_forward(x_big, params_bf16, block_b=128))
    assert out_bf16.shape == (256, ACTION_SIZE)
    assert jnp.allclose(out_bf16, ref_big, atol=1e-1, rtol=1e-1)

    print("KERNEL_OK")
</pallas_src>

<mosaic_0001>
module attributes {stable_mosaic.version = 11 : i64} {
  func.func @qnetwork_kernel(%arg0: i32, %arg1: memref<8x8xf32, #tpu.memory_space<vmem>>, %arg2: memref<8x64xf32, #tpu.memory_space<vmem>>, %arg3: memref<1x64xf32, #tpu.memory_space<vmem>>, %arg4: memref<64x64xf32, #tpu.memory_space<vmem>>, %arg5: memref<1x64xf32, #tpu.memory_space<vmem>>, %arg6: memref<64x128xf32, #tpu.memory_space<vmem>>, %arg7: memref<1x128xf32, #tpu.memory_space<vmem>>, %arg8: memref<8x128xf32, #tpu.memory_space<vmem>>) attributes {dimension_semantics = [#tpu.dimension_semantics<parallel>], iteration_bounds = array<i64: 1>, scalar_prefetch = 0 : i64, scratch_operands = 0 : i64, tpu.core_type = #tpu.core_type<tc>, window_params = [{transform_indices = @transform_0, window_bounds = array<i64: 8, 8>}, {pipeline_mode = #tpu.pipeline_mode<synchronous>, transform_indices = @transform_1, window_bounds = array<i64: 8, 64>}, {pipeline_mode = #tpu.pipeline_mode<synchronous>, transform_indices = @transform_2, window_bounds = array<i64: 1, 64>}, {pipeline_mode = #tpu.pipeline_mode<synchronous>, transform_indices = @transform_3, window_bounds = array<i64: 64, 64>}, {pipeline_mode = #tpu.pipeline_mode<synchronous>, transform_indices = @transform_4, window_bounds = array<i64: 1, 64>}, {pipeline_mode = #tpu.pipeline_mode<synchronous>, transform_indices = @transform_5, window_bounds = array<i64: 64, 128>}, {pipeline_mode = #tpu.pipeline_mode<synchronous>, transform_indices = @transform_6, window_bounds = array<i64: 1, 128>}, {transform_indices = @transform_7, window_bounds = array<i64: 8, 128>}]} {
    %c0 = arith.constant 0 : index
    %c0_0 = arith.constant 0 : index
    %0 = vector.load %arg2[%c0, %c0_0] : memref<8x64xf32, #tpu.memory_space<vmem>>, vector<8x64xf32>
    %c0_1 = arith.constant 0 : index
    %c0_2 = arith.constant 0 : index
    %1 = vector.load %arg4[%c0_1, %c0_2] : memref<64x64xf32, #tpu.memory_space<vmem>>, vector<64x64xf32>
    %c0_3 = arith.constant 0 : index
    %c0_4 = arith.constant 0 : index
    %2 = vector.load %arg6[%c0_3, %c0_4] : memref<64x128xf32, #tpu.memory_space<vmem>>, vector<64x128xf32>
    %c0_5 = arith.constant 0 : index
    %c0_6 = arith.constant 0 : index
    %3 = vector.load %arg1[%c0_5, %c0_6] : memref<8x8xf32, #tpu.memory_space<vmem>>, vector<8x8xf32>
    %cst = arith.constant dense<0.000000e+00> : vector<8x64xf32>
    %4 = tpu.matmul %3, %0, %cst {dimension_numbers = #tpu.dot_dimension_numbers<[1], [0], [0], [1], [0, 0, 1, 1], [], []>} : vector<8x8xf32>, vector<8x64xf32>, vector<8x64xf32> -> vector<8x64xf32>
    %c0_7 = arith.constant 0 : index
    %c0_8 = arith.constant 0 : index
    %5 = vector.load %arg3[%c0_7, %c0_8] : memref<1x64xf32, #tpu.memory_space<vmem>>, vector<1x64xf32>
    %6 = vector.broadcast %5 : vector<1x64xf32> to vector<8x64xf32>
    %7 = arith.addf %4, %6 : vector<8x64xf32>
    %cst_9 = arith.constant 0.000000e+00 : f32
    %8 = vector.broadcast %cst_9 : f32 to vector<8x64xf32>
    %9 = arith.maximumf %7, %8 : vector<8x64xf32>
    %cst_10 = arith.constant dense<0.000000e+00> : vector<8x64xf32>
    %10 = tpu.matmul %9, %1, %cst_10 {dimension_numbers = #tpu.dot_dimension_numbers<[1], [0], [0], [1], [0, 0, 1, 1], [], []>} : vector<8x64xf32>, vector<64x64xf32>, vector<8x64xf32> -> vector<8x64xf32>
    %c0_11 = arith.constant 0 : index
    %c0_12 = arith.constant 0 : index
    %11 = vector.load %arg5[%c0_11, %c0_12] : memref<1x64xf32, #tpu.memory_space<vmem>>, vector<1x64xf32>
    %12 = vector.broadcast %11 : vector<1x64xf32> to vector<8x64xf32>
    %13 = arith.addf %10, %12 : vector<8x64xf32>
    %cst_13 = arith.constant 0.000000e+00 : f32
    %14 = vector.broadcast %cst_13 : f32 to vector<8x64xf32>
    %15 = arith.maximumf %13, %14 : vector<8x64xf32>
    %cst_14 = arith.constant dense<0.000000e+00> : vector<8x128xf32>
    %16 = tpu.matmul %15, %2, %cst_14 {dimension_numbers = #tpu.dot_dimension_numbers<[1], [0], [0], [1], [0, 0, 1, 1], [], []>} : vector<8x64xf32>, vector<64x128xf32>, vector<8x128xf32> -> vector<8x128xf32>
    %c0_15 = arith.constant 0 : index
    %c0_16 = arith.constant 0 : index
    %17 = vector.load %arg7[%c0_15, %c0_16] : memref<1x128xf32, #tpu.memory_space<vmem>>, vector<1x128xf32>
    %18 = vector.broadcast %17 : vector<1x128xf32> to vector<8x128xf32>
    %19 = arith.addf %16, %18 : vector<8x128xf32>
    %c0_17 = arith.constant 0 : index
    %c0_18 = arith.constant 0 : index
    %20 = vector.load %arg8[%c0_17, %c0_18] : memref<8x128xf32, #tpu.memory_space<vmem>>, vector<8x128xf32>
    tpu.vector_store %arg8[%c0_17, %c0_18], %19 {strides = array<i32>} : memref<8x128xf32, #tpu.memory_space<vmem>>, vector<8x128xf32>,
    return
  }
  func.func @transform_0(%arg0: i32) -> (i32, i32) {
    %c0_i32 = arith.constant 0 : i32
    %c0_i32_0 = arith.constant 0 : i32
    return %arg0, %c0_i32 : i32, i32
  }
  func.func @transform_1(%arg0: i32) -> (i32, i32) {
    %c0_i32 = arith.constant 0 : i32
    %c0_i32_0 = arith.constant 0 : i32
    %c0_i32_1 = arith.constant 0 : i32
    return %c0_i32, %c0_i32_0 : i32, i32
  }
  func.func @transform_2(%arg0: i32) -> (i32, i32) {
    %c0_i32 = arith.constant 0 : i32
    %c0_i32_0 = arith.constant 0 : i32
    %c0_i32_1 = arith.constant 0 : i32
    return %c0_i32, %c0_i32_0 : i32, i32
  }
  func.func @transform_3(%arg0: i32) -> (i32, i32) {
    %c0_i32 = arith.constant 0 : i32
    %c0_i32_0 = arith.constant 0 : i32
    %c0_i32_1 = arith.constant 0 : i32
    return %c0_i32, %c0_i32_0 : i32, i32
  }
  func.func @transform_4(%arg0: i32) -> (i32, i32) {
    %c0_i32 = arith.constant 0 : i32
    %c0_i32_0 = arith.constant 0 : i32
    %c0_i32_1 = arith.constant 0 : i32
    return %c0_i32, %c0_i32_0 : i32, i32
  }
  func.func @transform_5(%arg0: i32) -> (i32, i32) {
    %c0_i32 = arith.constant 0 : i32
    %c0_i32_0 = arith.constant 0 : i32
    %c0_i32_1 = arith.constant 0 : i32
    return %c0_i32, %c0_i32_0 : i32, i32
  }
  func.func @transform_6(%arg0: i32) -> (i32, i32) {
    %c0_i32 = arith.constant 0 : i32
    %c0_i32_0 = arith.constant 0 : i32
    %c0_i32_1 = arith.constant 0 : i32
    return %c0_i32, %c0_i32_0 : i32, i32
  }
  func.func @transform_7(%arg0: i32) -> (i32, i32) {
    %c0_i32 = arith.constant 0 : i32
    %c0_i32_0 = arith.constant 0 : i32
    return %arg0, %c0_i32 : i32, i32
  }
}

</mosaic_0001>

<llo_original>
// kernel: tpu_custom_call.1
$region0: #{tpu_custom_call.1}
  #allocation0 [shape = 'u32[]', space=smem, size = 0x4, offset = 0x4, fixed_abs, tag = 'smem constant byte address 0x4 - core index']
  #allocation1 [shape = 'u32[144,128]{1,0:T(1,128)}', space=vmem, size = 0x12000, scoped, tag = 'internal scratch']
  %s0 = inlined_call_operand.hbm [shape: f32[8,8], index: 0, kind: input, shape index: {}]
  %s1 = inlined_call_operand.hbm [shape: f32[8,64], index: 1, kind: input, shape index: {}]
  %s2 = inlined_call_operand.vmem [shape: f32[1,64], index: 2, kind: input, shape index: {}]
  %s3 = inlined_call_operand.hbm [shape: f32[64,64], index: 3, kind: input, shape index: {}]
  %s4 = inlined_call_operand.vmem [shape: f32[1,64], index: 4, kind: input, shape index: {}]
  %s5 = inlined_call_operand.hbm [shape: f32[64,128], index: 5, kind: input, shape index: {}]
  %s6 = inlined_call_operand.vmem [shape: f32[1,128], index: 6, kind: input, shape index: {}]
  %s7 = inlined_call_operand.hbm [shape: f32[8,128], index: 7, kind: output, shape index: {}]
  %s8 = sld [smem:[#allocation0]]
  $region54: #{tpu_custom_call.1} parent=0
    _
  %s10 = ssub.s32 1, %s8
  %s11 = scalar_select 0, %s10, %s8
  $region1: #{tpu_custom_call.1} parent=0
    #allocation2 [shape = 'u8[4096]{0}', space=vmem, size = 0x1000, scoped, tag = 'input window, operand 0, single buffered']
    #allocation3 [shape = 's32[1]{0}', space=sflag, size = 0x4, scoped, tag = 'scoped memory for tpu_custom_call.1']
    #allocation4 [shape = 's32[1]{0}', space=sflag, size = 0x4, scoped, tag = 'scoped memory for tpu_custom_call.1']
    #allocation5 [shape = 'u8[4096]{0}', space=vmem, size = 0x1000, scoped, tag = 'input window, operand 1, single buffered']
    #allocation6 [shape = 's32[1]{0}', space=sflag, size = 0x4, scoped, tag = 'scoped memory for tpu_custom_call.1']
    #allocation7 [shape = 'u8[32768]{0}', space=vmem, size = 0x8000, scoped, tag = 'input window, operand 3, single buffered']
    #allocation8 [shape = 'u8[32768]{0}', space=vmem, size = 0x8000, scoped, tag = 'input window, operand 5, single buffered']
    #allocation9 [shape = 's32[1]{0}', space=sflag, size = 0x4, scoped, tag = 'scoped memory for tpu_custom_call.1']
    #allocation10 [shape = 'u8[4096]{0}', space=vmem, size = 0x1000, scoped, tag = 'output window, operand 0, single buffered']
    %12 = vsyncpa [#allocation3], 0
    %13 = vsyncpa [#allocation6], 0
    %14 = vsyncpa [#allocation9], 0
    %15 = vsyncpa [#allocation4], 0
    // Predicated region
    $region2: #{tpu_custom_call.1} parent=1 // pred_check
      _
    $region3: #{tpu_custom_call.1} parent=1 // pred_check_branch
      %17 = sbr.rel (0) target = $region5
    $region4: #{tpu_custom_call.1} parent=1 // pred_region
      %s19 = ssub.s32 128, 128
      %20 = vsyncadd [#allocation3], %s19
      %s22 = sshll.u32 [#allocation2], 4
      %s23 = int_to_ptr.vmem [resolvable:$true] %s22
      %25 = dma.hbm_to_vmem [thread:$0]  %s0, 128, %s23, [#allocation3]
    $region5: #{tpu_custom_call.1} parent=1 // pred_fallthru
      _
    // Predicated region
    $region6: #{tpu_custom_call.1} parent=1 // pred_check
      _
    $region7: #{tpu_custom_call.1} parent=1 // pred_check_branch
      %27 = sbr.rel (0) target = $region9
    $region8: #{tpu_custom_call.1} parent=1 // pred_region
      %s29 = ssub.s32 128, 128
      %30 = vsyncadd [#allocation6], %s29
      %s32 = sshll.u32 [#allocation5], 4
      %s33 = int_to_ptr.vmem [resolvable:$true] %s32
      %35 = dma.hbm_to_vmem [thread:$0]  %s1, 128, %s33, [#allocation6]
    $region9: #{tpu_custom_call.1} parent=1 // pred_fallthru
      _
    // Predicated region
    $region10: #{tpu_custom_call.1} parent=1 // pred_check
      _
    $region11: #{tpu_custom_call.1} parent=1 // pred_check_branch
      %37 = sbr.rel (0) target = $region13
    $region12: #{tpu_custom_call.1} parent=1 // pred_region
      _
    $region13: #{tpu_custom_call.1} parent=1 // pred_fallthru
      _
    // Predicated region
    $region14: #{tpu_custom_call.1} parent=1 // pred_check
      _
    $region15: #{tpu_custom_call.1} parent=1 // pred_check_branch
      %39 = sbr.rel (0) target = $region17
    $region16: #{tpu_custom_call.1} parent=1 // pred_region
      %s41 = ssub.s32 1024, 1024
      %42 = vsyncadd [#allocation6], %s41
      %s43 = sshll.u32 [#allocation7], 4
      %s44 = int_to_ptr.vmem [resolvable:$true] %s43
      %49 = dma.hbm_to_vmem [thread:$0]  %s3, 1024, %s44, [#allocation6], 128, 128, 8
    $region17: #{tpu_custom_call.1} parent=1 // pred_fallthru
      _
    // Predicated region
    $region18: #{tpu_custom_call.1} parent=1 // pred_check
      _
    $region19: #{tpu_custom_call.1} parent=1 // pred_check_branch
      %51 = sbr.rel (0) target = $region21
    $region20: #{tpu_custom_call.1} parent=1 // pred_region
      _
    $region21: #{tpu_custom_call.1} parent=1 // pred_fallthru
      _
    // Predicated region
    $region22: #{tpu_custom_call.1} parent=1 // pred_check
      _
    $region23: #{tpu_custom_call.1} parent=1 // pred_check_branch
      %53 = sbr.rel (0) target = $region25
    $region24: #{tpu_custom_call.1} parent=1 // pred_region
      %s55 = ssub.s32 1024, 1024
      %56 = vsyncadd [#allocation9], %s55
      %s57 = sshll.u32 [#allocation8], 4
      %s58 = int_to_ptr.vmem [resolvable:$true] %s57
      %63 = dma.hbm_to_vmem [thread:$0]  %s5, 1024, %s58, [#allocation9], 128, 128, 8
    $region25: #{tpu_custom_call.1} parent=1 // pred_fallthru
      _
    // Predicated region
    $region26: #{tpu_custom_call.1} parent=1 // pred_check
      _
    $region27: #{tpu_custom_call.1} parent=1 // pred_check_branch
      %65 = sbr.rel (0) target = $region29
    $region28: #{tpu_custom_call.1} parent=1 // pred_region
      _
    $region29: #{tpu_custom_call.1} parent=1 // pred_fallthru
      _
    // Predicated region
    $region30: #{tpu_custom_call.1} parent=1 // pred_check
      _
    $region31: #{tpu_custom_call.1} parent=1 // pred_check_branch
      %67 = sbr.rel (0) target = $region33
    $region32: #{tpu_custom_call.1} parent=1 // pred_region
      %68 = dma.done [#allocation3], 128
    $region33: #{tpu_custom_call.1} parent=1 // pred_fallthru
      _
    // Predicated region
    $region34: #{tpu_custom_call.1} parent=1 // pred_check
      _
    $region35: #{tpu_custom_call.1} parent=1 // pred_check_branch
      %70 = sbr.rel (0) target = $region37
    $region36: #{tpu_custom_call.1} parent=1 // pred_region
      %71 = dma.done [#allocation6], 128
    $region37: #{tpu_custom_call.1} parent=1 // pred_fallthru
      _
    // Predicated region
    $region38: #{tpu_custom_call.1} parent=1 // pred_check
      _
    $region39: #{tpu_custom_call.1} parent=1 // pred_check_branch
      %73 = sbr.rel (0) target = $region41
    $region40: #{tpu_custom_call.1} parent=1 // pred_region
      %74 = dma.done [#allocation6], 1024
    $region41: #{tpu_custom_call.1} parent=1 // pred_fallthru
      _
    // Predicated region
    $region42: #{tpu_custom_call.1} parent=1 // pred_check
      _
    $region43: #{tpu_custom_call.1} parent=1 // pred_check_branch
      %76 = sbr.rel (0) target = $region45
    $region44: #{tpu_custom_call.1} parent=1 // pred_region
      %77 = dma.done [#allocation9], 1024
    $region45: #{tpu_custom_call.1} parent=1 // pred_fallthru
      _
    %v78 = vld [vmem:[#allocation5] sm:$0xff]
    %v79 = vld [vmem:[#allocation7] sm:$0xff]
    %v80 = vld [vmem:[#allocation7 + $0x8] sm:$0xff]
    %v81 = vld [vmem:[#allocation7 + $0x10] sm:$0xff]
    %v82 = vld [vmem:[#allocation7 + $0x18] sm:$0xff]
    %v83 = vld [vmem:[#allocation7 + $0x20] sm:$0xff]
    %v84 = vld [vmem:[#allocation7 + $0x28] sm:$0xff]
    %v85 = vld [vmem:[#allocation7 + $0x30] sm:$0xff]
    %v86 = vld [vmem:[#allocation7 + $0x38] sm:$0xff]
    %v87 = vld [vmem:[#allocation8] sm:$0xff]
    %v88 = vld [vmem:[#allocation8 + $0x8] sm:$0xff]
    %v89 = vld [vmem:[#allocation8 + $0x10] sm:$0xff]
    %v90 = vld [vmem:[#allocation8 + $0x18] sm:$0xff]
    %v91 = vld [vmem:[#allocation8 + $0x20] sm:$0xff]
    %v92 = vld [vmem:[#allocation8 + $0x28] sm:$0xff]
    %v93 = vld [vmem:[#allocation8 + $0x30] sm:$0xff]
    %v94 = vld [vmem:[#allocation8 + $0x38] sm:$0xff]
    %v95 = vld [vmem:[#allocation2] sm:$0xff]
    %v96 = vld [vmem:[%s2] sm:$0x1]
    %v98 = vlaneseq
    %v99 = vshrl.u32 %v98, 7
    %v100 = vsub.s32 0, %v99
    %v101 = vrot.slane %v96, %v100
    %vm103 = vcmask 64512
    %v105 = vsel %vm103, %v95, 0
    %107 = vmatprep.subr.mxu0 0.0
    %108 = vmatpush1.msra.mxu0 0.0
    %109 = vmatprep.subr.mxu0 0.0
    %110 = vmatpush1.msra.mxu0 0.0
    %111 = vmatprep.subr.mxu0 0.0
    %112 = vmatpush1.msra.mxu0 0.0
    %113 = vmatprep.subr.mxu0 0.0
    %114 = vmatpush1.msra.mxu0 0.0
    %115 = vmatprep.subr.mxu0 0.0
    %116 = vmatpush1.msra.mxu0 0.0
    %117 = vmatprep.subr.mxu0 0.0
    %118 = vmatpush1.msra.mxu0 0.0
    %119 = vmatprep.subr.mxu0 0.0
    %120 = vmatpush1.msra.mxu0 0.0
    %121 = vmatprep.subr.mxu0 0.0
    %122 = vmatpush1.msra.mxu0 0.0
    %123 = vmatprep.subr.mxu0 0.0
    %124 = vmatpush1.msra.mxu0 0.0
    %125 = vmatprep.subr.mxu0 0.0
    %126 = vmatpush1.msra.mxu0 0.0
    %127 = vmatprep.subr.mxu0 0.0
    %128 = vmatpush1.msra.mxu0 0.0
    %129 = vmatprep.subr.mxu0 0.0
    %130 = vmatpush1.msra.mxu0 0.0
    %131 = vmatprep.subr.mxu0 0.0
    %132 = vmatpush1.msra.mxu0 0.0
    %133 = vmatprep.subr.mxu0 0.0
    %134 = vmatpush1.msra.mxu0 0.0
    %135 = vmatprep.subr.mxu0 0.0
    %136 = vmatpush1.msra.mxu0 0.0
    %137 = vmatprep.subr.mxu0 0.0
    %138 = vmatpush1.msra.mxu0 %v78
    %139 = vmatprep.subr.mxu0 0.0
    %140 = vmatpush2.msra.mxu0 0.0
    %141 = vmatprep.subr.mxu0 0.0
    %142 = vmatpush2.msra.mxu0 0.0
    %143 = vmatprep.subr.mxu0 0.0
    %144 = vmatpush2.msra.mxu0 0.0
    %145 = vmatprep.subr.mxu0 0.0
    %146 = vmatpush2.msra.mxu0 0.0
    %147 = vmatprep.subr.mxu0 0.0
    %148 = vmatpush2.msra.mxu0 0.0
    %149 = vmatprep.subr.mxu0 0.0
    %150 = vmatpush2.msra.mxu0 0.0
    %151 = vmatprep.subr.mxu0 0.0
    %152 = vmatpush2.msra.mxu0 0.0
    %153 = vmatprep.subr.mxu0 0.0
    %154 = vmatpush2.msra.mxu0 0.0
    %155 = vmatprep.subr.mxu0 0.0
    %156 = vmatpush2.msra.mxu0 0.0
    %157 = vmatprep.subr.mxu0 0.0
    %158 = vmatpush2.msra.mxu0 0.0
    %159 = vmatprep.subr.mxu0 0.0
    %160 = vmatpush2.msra.mxu0 0.0
    %161 = vmatprep.subr.mxu0 0.0
    %162 = vmatpush2.msra.mxu0 0.0
    %163 = vmatprep.subr.mxu0 0.0
    %164 = vmatpush2.msra.mxu0 0.0
    %165 = vmatprep.subr.mxu0 0.0
    %166 = vmatpush2.msra.mxu0 0.0
    %167 = vmatprep.subr.mxu0 0.0
    %168 = vmatpush2.msra.mxu0 0.0
    %169 = vmatprep.subr.mxu0 0.0
    %170 = vmatpush2.msra.mxu0 0.0
    %171 = vmatprep.mubr.f32.mxu0 0.0
    %172 = vmatmul.mubr.f32.gmra.mxu0 %v105
    %v173 = vpop.f32.mrf.mxu0
    %v174 = vadd.f32 %v101, %v173
    %v175 = vpop.f32.mrf.mxu0
    %176 = vdwg.mxu0
    %v177 = vmax.f32 %v174, 0.0
    %v178 = vld [vmem:[%s4] sm:$0x1]
    %v180 = vlaneseq
    %v181 = vshrl.u32 %v180, 7
    %v182 = vsub.s32 0, %v181
    %v183 = vrot.slane %v178, %v182
    %vm185 = vcmask 523264
    %v187 = vsel %vm185, %v177, 0
    %189 = vmatprep.subr.mxu0 0.0
    %190 = vmatpush1.msra.mxu0 0.0
    %191 = vmatprep.subr.mxu0 0.0
    %192 = vmatpush1.msra.mxu0 0.0
    %193 = vmatprep.subr.mxu0 0.0
    %194 = vmatpush1.msra.mxu0 0.0
    %195 = vmatprep.subr.mxu0 0.0
    %196 = vmatpush1.msra.mxu0 0.0
    %197 = vmatprep.subr.mxu0 0.0
    %198 = vmatpush1.msra.mxu0 0.0
    %199 = vmatprep.subr.mxu0 0.0
    %200 = vmatpush1.msra.mxu0 0.0
    %201 = vmatprep.subr.mxu0 0.0
    %202 = vmatpush1.msra.mxu0 0.0
    %203 = vmatprep.subr.mxu0 0.0
    %204 = vmatpush1.msra.mxu0 0.0
    %205 = vmatprep.subr.mxu0 0.0
    %206 = vmatpush1.msra.mxu0 %v86
    %207 = vmatprep.subr.mxu0 0.0
    %208 = vmatpush1.msra.mxu0 %v85
    %209 = vmatprep.subr.mxu0 0.0
    %210 = vmatpush1.msra.mxu0 %v84
    %211 = vmatprep.subr.mxu0 0.0
    %212 = vmatpush1.msra.mxu0 %v83
    %213 = vmatprep.subr.mxu0 0.0
    %214 = vmatpush1.msra.mxu0 %v82
    %215 = vmatprep.subr.mxu0 0.0
    %216 = vmatpush1.msra.mxu0 %v81
    %217 = vmatprep.subr.mxu0 0.0
    %218 = vmatpush1.msra.mxu0 %v80
    %219 = vmatprep.subr.mxu0 0.0
    %220 = vmatpush1.msra.mxu0 %v79
    %221 = vmatprep.subr.mxu0 0.0
    %222 = vmatpush2.msra.mxu0 0.0
    %223 = vmatprep.subr.mxu0 0.0
    %224 = vmatpush2.msra.mxu0 0.0
    %225 = vmatprep.subr.mxu0 0.0
    %226 = vmatpush2.msra.mxu0 0.0
    %227 = vmatprep.subr.mxu0 0.0
    %228 = vmatpush2.msra.mxu0 0.0
    %229 = vmatprep.subr.mxu0 0.0
    %230 = vmatpush2.msra.mxu0 0.0
    %231 = vmatprep.subr.mxu0 0.0
    %232 = vmatpush2.msra.mxu0 0.0
    %233 = vmatprep.subr.mxu0 0.0
    %234 = vmatpush2.msra.mxu0 0.0
    %235 = vmatprep.subr.mxu0 0.0
    %236 = vmatpush2.msra.mxu0 0.0
    %237 = vmatprep.subr.mxu0 0.0
    %238 = vmatpush2.msra.mxu0 0.0
    %239 = vmatprep.subr.mxu0 0.0
    %240 = vmatpush2.msra.mxu0 0.0
    %241 = vmatprep.subr.mxu0 0.0
    %242 = vmatpush2.msra.mxu0 0.0
    %243 = vmatprep.subr.mxu0 0.0
    %244 = vmatpush2.msra.mxu0 0.0
    %245 = vmatprep.subr.mxu0 0.0
    %246 = vmatpush2.msra.mxu0 0.0
    %247 = vmatprep.subr.mxu0 0.0
    %248 = vmatpush2.msra.mxu0 0.0
    %249 = vmatprep.subr.mxu0 0.0
    %250 = vmatpush2.msra.mxu0 0.0
    %251 = vmatprep.subr.mxu0 0.0
    %252 = vmatpush2.msra.mxu0 0.0
    %253 = vmatprep.mubr.f32.mxu0 0.0
    %254 = vmatmul.mubr.f32.gmra.mxu0 %v187
    %v255 = vpop.f32.mrf.mxu0
    %v256 = vadd.f32 %v183, %v255
    %v257 = vpop.f32.mrf.mxu0
    %258 = vdwg.mxu0
    %v259 = vmax.f32 %v256, 0.0
    %v260 = vld [vmem:[%s6] sm:$0x1]
    %v262 = vlaneseq
    %v263 = vshrl.u32 %v262, 7
    %v264 = vsub.s32 0, %v263
    %v265 = vrot.slane %v260, %v264
    %v268 = vsel %vm185, %v259, 0
    %270 = vmatprep.subr.mxu0 0.0
    %271 = vmatpush1.msra.mxu0 0.0
    %272 = vmatprep.subr.mxu0 0.0
    %273 = vmatpush1.msra.mxu0 0.0
    %274 = vmatprep.subr.mxu0 0.0
    %275 = vmatpush1.msra.mxu0 0.0
    %276 = vmatprep.subr.mxu0 0.0
    %277 = vmatpush1.msra.mxu0 0.0
    %278 = vmatprep.subr.mxu0 0.0
    %279 = vmatpush1.msra.mxu0 0.0
    %280 = vmatprep.subr.mxu0 0.0
    %281 = vmatpush1.msra.mxu0 0.0
    %282 = vmatprep.subr.mxu0 0.0
    %283 = vmatpush1.msra.mxu0 0.0
    %284 = vmatprep.subr.mxu0 0.0
    %285 = vmatpush1.msra.mxu0 0.0
    %286 = vmatprep.subr.mxu0 0.0
    %287 = vmatpush1.msra.mxu0 %v94
    %288 = vmatprep.subr.mxu0 0.0
    %289 = vmatpush1.msra.mxu0 %v93
    %290 = vmatprep.subr.mxu0 0.0
    %291 = vmatpush1.msra.mxu0 %v92
    %292 = vmatprep.subr.mxu0 0.0
    %293 = vmatpush1.msra.mxu0 %v91
    %294 = vmatprep.subr.mxu0 0.0
    %295 = vmatpush1.msra.mxu0 %v90
    %296 = vmatprep.subr.mxu0 0.0
    %297 = vmatpush1.msra.mxu0 %v89
    %298 = vmatprep.subr.mxu0 0.0
    %299 = vmatpush1.msra.mxu0 %v88
    %300 = vmatprep.subr.mxu0 0.0
    %301 = vmatpush1.msra.mxu0 %v87
    %302 = vmatprep.subr.mxu0 0.0
    %303 = vmatpush2.msra.mxu0 0.0
    %304 = vmatprep.subr.mxu0 0.0
    %305 = vmatpush2.msra.mxu0 0.0
    %306 = vmatprep.subr.mxu0 0.0
    %307 = vmatpush2.msra.mxu0 0.0
    %308 = vmatprep.subr.mxu0 0.0
    %309 = vmatpush2.msra.mxu0 0.0
    %310 = vmatprep.subr.mxu0 0.0
    %311 = vmatpush2.msra.mxu0 0.0
    %312 = vmatprep.subr.mxu0 0.0
    %313 = vmatpush2.msra.mxu0 0.0
    %314 = vmatprep.subr.mxu0 0.0
    %315 = vmatpush2.msra.mxu0 0.0
    %316 = vmatprep.subr.mxu0 0.0
    %317 = vmatpush2.msra.mxu0 0.0
    %318 = vmatprep.subr.mxu0 0.0
    %319 = vmatpush2.msra.mxu0 0.0
    %320 = vmatprep.subr.mxu0 0.0
    %321 = vmatpush2.msra.mxu0 0.0
    %322 = vmatprep.subr.mxu0 0.0
    %323 = vmatpush2.msra.mxu0 0.0
    %324 = vmatprep.subr.mxu0 0.0
    %325 = vmatpush2.msra.mxu0 0.0
    %326 = vmatprep.subr.mxu0 0.0
    %327 = vmatpush2.msra.mxu0 0.0
    %328 = vmatprep.subr.mxu0 0.0
    %329 = vmatpush2.msra.mxu0 0.0
    %330 = vmatprep.subr.mxu0 0.0
    %331 = vmatpush2.msra.mxu0 0.0
    %332 = vmatprep.subr.mxu0 0.0
    %333 = vmatpush2.msra.mxu0 0.0
    %334 = vmatprep.mubr.f32.mxu0 0.0
    %335 = vmatmul.mubr.f32.gmra.mxu0 %v268
    %v336 = vpop.f32.mrf.mxu0
    %v337 = vadd.f32 %v265, %v336
    %v338 = vpop.f32.mrf.mxu0
    %339 = vdwg.mxu0
    %340 = vst [vmem:[#allocation10] sm:$0xff] %v337
    // Predicated region
    $region46: #{tpu_custom_call.1} parent=1 // pred_check
      _
    $region47: #{tpu_custom_call.1} parent=1 // pred_check_branch
      %342 = sbr.rel (0) target = $region49
    $region48: #{tpu_custom_call.1} parent=1 // pred_region
      %s344 = ssub.s32 128, 128
      %345 = vsyncadd [#allocation4], %s344
      %s347 = sshll.u32 [#allocation10], 4
      %s348 = int_to_ptr.vmem [resolvable:$true] %s347
      %350 = dma.vmem_to_hbm [thread:$0]  %s348, 128, %s7, [#allocation4]
    $region49: #{tpu_custom_call.1} parent=1 // pred_fallthru
      _
    // Predicated region
    $region50: #{tpu_custom_call.1} parent=1 // pred_check
      _
    $region51: #{tpu_custom_call.1} parent=1 // pred_check_branch
      %352 = sbr.rel (0) target = $region53
    $region52: #{tpu_custom_call.1} parent=1 // pred_region
      %353 = dma.done [#allocation4], 128
    $region53: #{tpu_custom_call.1} parent=1 // pred_fallthru
      _
    %354 = vsyncpa [#allocation3], 1
    %355 = vsyncpa [#allocation6], 1
    %356 = vsyncpa [#allocation9], 1
    %357 = vsyncpa [#allocation4], 1

</llo_original>
